<compile_context>
chip_gen: v5e
topology: v5e:2x2
jax: 0.10.0
libtpu: 0.0.40
codegen_flags: <defaults>
</compile_context>

<pallas_src>
import functools

import jax
import jax.numpy as jnp
from jax import lax
from jax.experimental import pallas as pl
from jax.experimental.pallas import tpu as pltpu


def _round_up(v, m):
    return ((v + m - 1) // m) * m


def _pick_tiles(n):
    """Returns (n_pad, row_tile, col_tile)."""
    if n <= 512:
        n_pad = _round_up(n, 8)          # single tile both ways
        return n_pad, n_pad, n_pad
    tm, tn = 256, 512                    # multiples of 256 -> full MXU passes
    n_pad = _round_up(n, 512)            # lcm(tm, tn)
    return n_pad, tm, tn


def _triplet_dist_kernel(x_row_ref, x_col_ref, t_row_ref, t_col_ref,
                         ap_ref, an_ref, ap_run, an_run, *, n, tn):
    j = pl.program_id(1)

    @pl.when(j == 0)
    def _():
        ap_run[...] = jnp.full_like(ap_run, -jnp.inf)
        an_run[...] = jnp.full_like(an_run, jnp.inf)

    x_row = x_row_ref[...]                       # (tm, d_pad)  resident over j
    x_col = x_col_ref[...]                       # (tn, d_pad)  streamed per j

    # Gram tile on the MXU: contract feature axis with feature axis (the MXU
    # consumes the transposed RHS natively -> no XLU transpose of x).
    gram = lax.dot_general(
        x_row, x_col,
        dimension_numbers=(((1,), (1,)), ((), ())),
        preferred_element_type=jnp.float32)      # (tm, tn) f32

    # Per-column squared norms directly in (1, tn) lane orientation via a thin
    # ones-row matmul: no axis-0 sublane reduction, no transpose, no iota mask.
    x_col_f32 = x_col.astype(jnp.float32)
    ones_row = jnp.ones((1, x_col.shape[1]), jnp.float32)
    sq_col = lax.dot_general(
        ones_row, x_col_f32 * x_col_f32,
        dimension_numbers=(((1,), (1,)), ((), ())),
        preferred_element_type=jnp.float32)      # (1, tn)

    # sq_row is constant per row: hoisted out of the (tm, tn) pass (clamp, max,
    # min and sqrt are monotone), so only sub + scale touch the full tile.
    d2p = sq_col - 2.0 * gram                    # (tm, tn) partial sq-distance

    same = t_row_ref[...] == t_col_ref[...]      # (tm, tn) same-label mask
    col_valid = (j * tn + lax.broadcasted_iota(jnp.int32, (1, tn), 1)) < n

    pos = jnp.where(same & col_valid, d2p, -jnp.inf)
    neg = jnp.where((~same) & col_valid, d2p, jnp.inf)
    ap_run[...] = jnp.maximum(ap_run[...], jnp.max(pos, axis=1, keepdims=True))
    an_run[...] = jnp.minimum(an_run[...], jnp.min(neg, axis=1, keepdims=True))

    @pl.when(j == pl.num_programs(1) - 1)
    def _():
        x_row_f32 = x_row.astype(jnp.float32)
        sq_row = jnp.sum(x_row_f32 * x_row_f32, axis=1, keepdims=True)  # (tm,1)
        # sqrt applied to only 2 values per row (EUP work n^2 -> 2n).
        ap_ref[...] = jnp.sqrt(jnp.maximum(sq_row + ap_run[...], 1e-12))
        an_ref[...] = jnp.sqrt(jnp.maximum(sq_row + an_run[...], 1e-12))


def ori_triplet_loss(inputs, targets, margin=0.3, matmul_dtype=None):
    """inputs: (n, feat_dim) features; targets: (n,) int labels.

    Returns (loss, correct_fraction) matching OriTripletLoss.forward.
    Pass matmul_dtype=jnp.bfloat16 for a faster Gram matmul (esp. v5e) at a
    small accuracy cost. Rows with no different-label sample get dist_an=+inf
    (0 loss, counted correct); PyTorch would error on an empty masked min.
    """
    n, d = inputs.shape
    x = inputs if matmul_dtype is None else inputs.astype(matmul_dtype)

    d_pad = _round_up(d, 128)                    # lane-dense feature axis
    n_pad, tm, tn = _pick_tiles(n)
    if (d_pad != d) or (n_pad != n):
        # Zero padding does not change norms / the Gram matrix; padded columns
        # are masked in-kernel, padded rows are sliced off below.
        x = jnp.pad(x, ((0, n_pad - n), (0, d_pad - d)))

    t = targets.astype(jnp.int32)
    if n_pad != n:
        t = jnp.pad(t, (0, n_pad - n))
    t_row = t.reshape(n_pad, 1)
    t_col = t.reshape(1, n_pad)

    itemsize = jnp.dtype(x.dtype).itemsize
    est = (2 * (tm + tn) * d_pad * itemsize      # double-buffered x tiles
           + 6 * tm * tn * 4                     # gram/d2p/mask/select temps
           + 8 * (tm + tn) * 4)                  # labels, scratch, outputs
    vmem_limit = int(min(max(est * 5 // 4 + (2 << 20), 32 << 20), 64 << 20))

    kernel = functools.partial(_triplet_dist_kernel, n=n, tn=tn)
    grid = (n_pad // tm, n_pad // tn)

    dist_ap, dist_an = pl.pallas_call(
        kernel,
        out_shape=(jax.ShapeDtypeStruct((n_pad, 1), jnp.float32),
                   jax.ShapeDtypeStruct((n_pad, 1), jnp.float32)),
        grid_spec=pltpu.PrefetchScalarGridSpec(
            num_scalar_prefetch=0,
            grid=grid,
            in_specs=[
                pl.BlockSpec((tm, d_pad), lambda i, j: (i, 0)),  # row tile (resident over j)
                pl.BlockSpec((tn, d_pad), lambda i, j: (j, 0)),  # column tile (streamed)
                pl.BlockSpec((tm, 1), lambda i, j: (i, 0)),      # labels, row view
                pl.BlockSpec((1, tn), lambda i, j: (0, j)),      # labels, column view
            ],
            out_specs=[
                pl.BlockSpec((tm, 1), lambda i, j: (i, 0)),
                pl.BlockSpec((tm, 1), lambda i, j: (i, 0)),
            ],
            scratch_shapes=[pltpu.VMEM((tm, 1), jnp.float32),
                            pltpu.VMEM((tm, 1), jnp.float32)],
        ),
        compiler_params=pltpu.CompilerParams(
            dimension_semantics=("parallel", "arbitrary"),
            vmem_limit_bytes=vmem_limit),
    )(x, x, t_row, t_col)

    dist_ap = dist_ap[:n, 0]
    dist_an = dist_an[:n, 0]
    # Tiny O(n) epilogue kept outside the kernel so the row-tile grid axis can
    # stay "parallel" across TensorCores without racing on a shared scalar.
    loss = jnp.mean(jnp.maximum(margin + dist_ap - dist_an, 0.0))
    correct = jnp.mean((dist_an >= dist_ap).astype(jnp.float32))
    return loss, correct


def _reference(inputs, targets, margin=0.3):
    # Pure-JAX mirror of the PyTorch forward, for a sanity check.
    x = inputs.astype(jnp.float32)
    sq = jnp.sum(x * x, axis=1, keepdims=True)
    dist = jnp.sqrt(jnp.maximum(sq + sq.T - 2.0 * (x @ x.T), 1e-12))
    mask = targets[:, None] == targets[None, :]
    dist_ap = jnp.max(jnp.where(mask, dist, -jnp.inf), axis=1)
    dist_an = jnp.min(jnp.where(mask, jnp.inf, dist), axis=1)
    loss = jnp.mean(jnp.maximum(margin + dist_ap - dist_an, 0.0))
    correct = jnp.mean((dist_an >= dist_ap).astype(jnp.float32))
    return loss, correct


if __name__ == "__main__":
    n, feat_dim = 8, 128   # lane-dense feature dimension
    key = jax.random.PRNGKey(0)
    inputs = jax.random.normal(key, (n, feat_dim), dtype=jnp.float32)
    # labels: 4 classes, 2 samples each (every anchor has a positive & negative)
    targets = jnp.array([0, 0, 1, 1, 2, 2, 3, 3], dtype=jnp.int32)

    loss, correct = ori_triplet_loss(inputs, targets, margin=0.3)
    loss = jax.block_until_ready(loss)
    correct = jax.block_until_ready(correct)

    ref_loss, ref_correct = _reference(inputs, targets, margin=0.3)
    assert jnp.allclose(loss, ref_loss, rtol=1e-5, atol=1e-5), (loss, ref_loss)
    assert jnp.allclose(correct, ref_correct), (correct, ref_correct)

    print("KERNEL_OK")
</pallas_src>

<mosaic_0001>
module attributes {stable_mosaic.version = 11 : i64} {
  func.func @_triplet_dist_kernel(%arg0: i32, %arg1: i32, %arg2: memref<8x128xf32, #tpu.memory_space<vmem>>, %arg3: memref<8x128xf32, #tpu.memory_space<vmem>>, %arg4: memref<8x1xi32, #tpu.memory_space<vmem>>, %arg5: memref<1x8xi32, #tpu.memory_space<vmem>>, %arg6: memref<8x1xf32, #tpu.memory_space<vmem>>, %arg7: memref<8x1xf32, #tpu.memory_space<vmem>>, %arg8: memref<8x1xf32, #tpu.memory_space<vmem>>, %arg9: memref<8x1xf32, #tpu.memory_space<vmem>>) attributes {dimension_semantics = [#tpu.dimension_semantics<parallel>, #tpu.dimension_semantics<arbitrary>], iteration_bounds = array<i64: 1, 1>, scalar_prefetch = 0 : i64, scratch_operands = 2 : i64, tpu.core_type = #tpu.core_type<tc>, window_params = [{transform_indices = @transform_0, window_bounds = array<i64: 8, 128>}, {transform_indices = @transform_1, window_bounds = array<i64: 8, 128>}, {transform_indices = @transform_2, window_bounds = array<i64: 8, 1>}, {transform_indices = @transform_3, window_bounds = array<i64: 1, 8>}, {transform_indices = @transform_4, window_bounds = array<i64: 8, 1>}, {transform_indices = @transform_5, window_bounds = array<i64: 8, 1>}]} {
    %c0_i32 = arith.constant 0 : i32
    %0 = arith.cmpi eq, %arg1, %c0_i32 : i32
    %1 = arith.extui %0 : i1 to i32
    %c0_i32_0 = arith.constant 0 : i32
    %2 = arith.cmpi ne, %1, %c0_i32_0 : i32
    scf.if %2 {
      %cst_27 = arith.constant 0xFF800000 : f32
      %46 = vector.broadcast %cst_27 : f32 to vector<8x1xf32>
      %c0_28 = arith.constant 0 : index
      %c0_29 = arith.constant 0 : index
      %47 = vector.load %arg8[%c0_28, %c0_29] : memref<8x1xf32, #tpu.memory_space<vmem>>, vector<8x1xf32>
      tpu.vector_store %arg8[%c0_28, %c0_29], %46 {strides = array<i32>} : memref<8x1xf32, #tpu.memory_space<vmem>>, vector<8x1xf32>,
      %cst_30 = arith.constant 0x7F800000 : f32
      %48 = vector.broadcast %cst_30 : f32 to vector<8x1xf32>
      %c0_31 = arith.constant 0 : index
      %c0_32 = arith.constant 0 : index
      %49 = vector.load %arg9[%c0_31, %c0_32] : memref<8x1xf32, #tpu.memory_space<vmem>>, vector<8x1xf32>
      tpu.vector_store %arg9[%c0_31, %c0_32], %48 {strides = array<i32>} : memref<8x1xf32, #tpu.memory_space<vmem>>, vector<8x1xf32>,
    } else {
    }
    %c0 = arith.constant 0 : index
    %c0_1 = arith.constant 0 : index
    %3 = vector.load %arg2[%c0, %c0_1] : memref<8x128xf32, #tpu.memory_space<vmem>>, vector<8x128xf32>
    %c0_2 = arith.constant 0 : index
    %c0_3 = arith.constant 0 : index
    %4 = vector.load %arg3[%c0_2, %c0_3] : memref<8x128xf32, #tpu.memory_space<vmem>>, vector<8x128xf32>
    %cst = arith.constant dense<0.000000e+00> : vector<8x8xf32>
    %5 = tpu.matmul %3, %4, %cst {dimension_numbers = #tpu.dot_dimension_numbers<[1], [1], [0], [0], [0, 0, 1, 0], [], []>} : vector<8x128xf32>, vector<8x128xf32>, vector<8x8xf32> -> vector<8x8xf32>
    %cst_4 = arith.constant 1.000000e+00 : f32
    %6 = vector.broadcast %cst_4 : f32 to vector<1x128xf32>
    %7 = arith.mulf %4, %4 : vector<8x128xf32>
    %cst_5 = arith.constant dense<0.000000e+00> : vector<1x8xf32>
    %8 = tpu.matmul %6, %7, %cst_5 {dimension_numbers = #tpu.dot_dimension_numbers<[1], [1], [0], [0], [0, 0, 1, 0], [], []>} : vector<1x128xf32>, vector<8x128xf32>, vector<1x8xf32> -> vector<1x8xf32>
    %cst_6 = arith.constant 2.000000e+00 : f32
    %9 = vector.broadcast %cst_6 : f32 to vector<8x8xf32>
    %10 = arith.mulf %9, %5 : vector<8x8xf32>
    %11 = vector.broadcast %8 : vector<1x8xf32> to vector<8x8xf32>
    %12 = arith.subf %11, %10 : vector<8x8xf32>
    %c0_7 = arith.constant 0 : index
    %c0_8 = arith.constant 0 : index
    %13 = vector.load %arg4[%c0_7, %c0_8] : memref<8x1xi32, #tpu.memory_space<vmem>>, vector<8x1xi32>
    %c0_9 = arith.constant 0 : index
    %c0_10 = arith.constant 0 : index
    %14 = vector.load %arg5[%c0_9, %c0_10] : memref<1x8xi32, #tpu.memory_space<vmem>>, vector<1x8xi32>
    %15 = vector.broadcast %13 : vector<8x1xi32> to vector<8x8xi32>
    %16 = vector.broadcast %14 : vector<1x8xi32> to vector<8x8xi32>
    %17 = arith.cmpi eq, %15, %16 : vector<8x8xi32>
    %c8_i32 = arith.constant 8 : i32
    %18 = arith.muli %arg1, %c8_i32 : i32
    %19 = tpu.iota {dimensions = array<i32: 1>} : vector<1x8xi32>
    %20 = vector.broadcast %18 : i32 to vector<1x8xi32>
    %21 = arith.addi %20, %19 : vector<1x8xi32>
    %c8_i32_11 = arith.constant 8 : i32
    %22 = vector.broadcast %c8_i32_11 : i32 to vector<1x8xi32>
    %23 = arith.cmpi slt, %21, %22 : vector<1x8xi32>
    %24 = vector.broadcast %23 : vector<1x8xi1> to vector<8x8xi1>
    %25 = arith.andi %17, %24 : vector<8x8xi1>
    %cst_12 = arith.constant 0xFF800000 : f32
    %26 = vector.broadcast %cst_12 : f32 to vector<8x8xf32>
    %27 = arith.select %25, %12, %26 : vector<8x8xi1>, vector<8x8xf32>
    %cst_13 = arith.constant dense<true> : vector<8x8xi1>
    %28 = arith.xori %17, %cst_13 : vector<8x8xi1>
    %29 = vector.broadcast %23 : vector<1x8xi1> to vector<8x8xi1>
    %30 = arith.andi %28, %29 : vector<8x8xi1>
    %cst_14 = arith.constant 0x7F800000 : f32
    %31 = vector.broadcast %cst_14 : f32 to vector<8x8xf32>
    %32 = arith.select %30, %12, %31 : vector<8x8xi1>, vector<8x8xf32>
    %c0_15 = arith.constant 0 : index
    %c0_16 = arith.constant 0 : index
    %33 = vector.load %arg8[%c0_15, %c0_16] : memref<8x1xf32, #tpu.memory_space<vmem>>, vector<8x1xf32>
    %cst_17 = arith.constant dense<0xFF800000> : vector<8xf32>
    %34 = vector.multi_reduction <maximumf>, %27, %cst_17 [1] : vector<8x8xf32> to vector<8xf32>
    %35 = vector.shape_cast %34 : vector<8xf32> to vector<8x1xf32>
    %36 = arith.maximumf %33, %35 : vector<8x1xf32>
    %c0_18 = arith.constant 0 : index
    %c0_19 = arith.constant 0 : index
    %37 = vector.load %arg8[%c0_18, %c0_19] : memref<8x1xf32, #tpu.memory_space<vmem>>, vector<8x1xf32>
    tpu.vector_store %arg8[%c0_18, %c0_19], %36 {strides = array<i32>} : memref<8x1xf32, #tpu.memory_space<vmem>>, vector<8x1xf32>,
    %c0_20 = arith.constant 0 : index
    %c0_21 = arith.constant 0 : index
    %38 = vector.load %arg9[%c0_20, %c0_21] : memref<8x1xf32, #tpu.memory_space<vmem>>, vector<8x1xf32>
    %cst_22 = arith.constant dense<0x7F800000> : vector<8xf32>
    %39 = vector.multi_reduction <minimumf>, %32, %cst_22 [1] : vector<8x8xf32> to vector<8xf32>
    %40 = vector.shape_cast %39 : vector<8xf32> to vector<8x1xf32>
    %41 = arith.minimumf %38, %40 : vector<8x1xf32>
    %c0_23 = arith.constant 0 : index
    %c0_24 = arith.constant 0 : index
    %42 = vector.load %arg9[%c0_23, %c0_24] : memref<8x1xf32, #tpu.memory_space<vmem>>, vector<8x1xf32>
    tpu.vector_store %arg9[%c0_23, %c0_24], %41 {strides = array<i32>} : memref<8x1xf32, #tpu.memory_space<vmem>>, vector<8x1xf32>,
    %c0_i32_25 = arith.constant 0 : i32
    %43 = arith.cmpi eq, %arg1, %c0_i32_25 : i32
    %44 = arith.extui %43 : i1 to i32
    %c0_i32_26 = arith.constant 0 : i32
    %45 = arith.cmpi ne, %44, %c0_i32_26 : i32
    scf.if %45 {
      %46 = arith.mulf %3, %3 : vector<8x128xf32>
      %cst_27 = arith.constant dense<0.000000e+00> : vector<8xf32>
      %47 = vector.multi_reduction <add>, %46, %cst_27 [1] : vector<8x128xf32> to vector<8xf32>
      %48 = vector.shape_cast %47 : vector<8xf32> to vector<8x1xf32>
      %c0_28 = arith.constant 0 : index
      %c0_29 = arith.constant 0 : index
      %49 = vector.load %arg8[%c0_28, %c0_29] : memref<8x1xf32, #tpu.memory_space<vmem>>, vector<8x1xf32>
      %50 = arith.addf %48, %49 : vector<8x1xf32>
      %cst_30 = arith.constant 9.99999996E-13 : f32
      %51 = vector.broadcast %cst_30 : f32 to vector<8x1xf32>
      %52 = arith.maximumf %50, %51 : vector<8x1xf32>
      %53 = math.sqrt %52 : vector<8x1xf32>
      %c0_31 = arith.constant 0 : index
      %c0_32 = arith.constant 0 : index
      %54 = vector.load %arg6[%c0_31, %c0_32] : memref<8x1xf32, #tpu.memory_space<vmem>>, vector<8x1xf32>
      tpu.vector_store %arg6[%c0_31, %c0_32], %53 {strides = array<i32>} : memref<8x1xf32, #tpu.memory_space<vmem>>, vector<8x1xf32>,
      %c0_33 = arith.constant 0 : index
      %c0_34 = arith.constant 0 : index
      %55 = vector.load %arg9[%c0_33, %c0_34] : memref<8x1xf32, #tpu.memory_space<vmem>>, vector<8x1xf32>
      %56 = arith.addf %48, %55 : vector<8x1xf32>
      %cst_35 = arith.constant 9.99999996E-13 : f32
      %57 = vector.broadcast %cst_35 : f32 to vector<8x1xf32>
      %58 = arith.maximumf %56, %57 : vector<8x1xf32>
      %59 = math.sqrt %58 : vector<8x1xf32>
      %c0_36 = arith.constant 0 : index
      %c0_37 = arith.constant 0 : index
      %60 = vector.load %arg7[%c0_36, %c0_37] : memref<8x1xf32, #tpu.memory_space<vmem>>, vector<8x1xf32>
      tpu.vector_store %arg7[%c0_36, %c0_37], %59 {strides = array<i32>} : memref<8x1xf32, #tpu.memory_space<vmem>>, vector<8x1xf32>,
    } else {
    }
    return
  }
  func.func @transform_0(%arg0: i32, %arg1: i32) -> (i32, i32) {
    %c0_i32 = arith.constant 0 : i32
    %c0_i32_0 = arith.constant 0 : i32
    return %arg0, %c0_i32 : i32, i32
  }
  func.func @transform_1(%arg0: i32, %arg1: i32) -> (i32, i32) {
    %c0_i32 = arith.constant 0 : i32
    %c0_i32_0 = arith.constant 0 : i32
    return %arg1, %c0_i32 : i32, i32
  }
  func.func @transform_2(%arg0: i32, %arg1: i32) -> (i32, i32) {
    %c0_i32 = arith.constant 0 : i32
    %c0_i32_0 = arith.constant 0 : i32
    return %arg0, %c0_i32 : i32, i32
  }
  func.func @transform_3(%arg0: i32, %arg1: i32) -> (i32, i32) {
    %c0_i32 = arith.constant 0 : i32
    %c0_i32_0 = arith.constant 0 : i32
    return %c0_i32, %arg1 : i32, i32
  }
  func.func @transform_4(%arg0: i32, %arg1: i32) -> (i32, i32) {
    %c0_i32 = arith.constant 0 : i32
    %c0_i32_0 = arith.constant 0 : i32
    return %arg0, %c0_i32 : i32, i32
  }
  func.func @transform_5(%arg0: i32, %arg1: i32) -> (i32, i32) {
    %c0_i32 = arith.constant 0 : i32
    %c0_i32_0 = arith.constant 0 : i32
    return %arg0, %c0_i32 : i32, i32
  }
}

</mosaic_0001>

<llo_original>
// kernel: tpu_custom_call.1
$region0: #{tpu_custom_call.1}
  #allocation0 [shape = 'u32[]', space=smem, size = 0x4, offset = 0x4, fixed_abs, tag = 'smem constant byte address 0x4 - core index']
  #allocation1 [shape = 'u32[72,128]{1,0:T(1,128)}', space=vmem, size = 0x9000, scoped, tag = 'internal scratch']
  #allocation2 [shape = 'f32[8,1]{1,0:T(8,128)}', space=vmem, size = 0x1000, scoped, tag = 'scratch operand']
  #allocation3 [shape = 'f32[8,1]{1,0:T(8,128)}', space=vmem, size = 0x1000, scoped, tag = 'scratch operand']
  %s0 = inlined_call_operand.vmem [shape: f32[8,128], index: 0, kind: input, shape index: {}]
  %s1 = inlined_call_operand.hbm [shape: f32[8,128], index: 1, kind: input, shape index: {}]
  %s2 = inlined_call_operand.vmem [shape: s32[8,1], index: 2, kind: input, shape index: {}]
  %s3 = inlined_call_operand.vmem [shape: s32[1,8], index: 3, kind: input, shape index: {}]
  %s4 = inlined_call_operand.vmem [shape: f32[8,1], index: 4, kind: output, shape index: {0}]
  %s5 = inlined_call_operand.vmem [shape: f32[8,1], index: 5, kind: output, shape index: {1}]
  %6 = xla_tuple %s4, %s5
  %s7 = sld [smem:[#allocation0]]
  $region46: #{tpu_custom_call.1} parent=0
    _
  %s9 = ssub.s32 1, %s7
  %s10 = scalar_select 0, %s9, %s7
  $region1: #{tpu_custom_call.1} parent=0
    #allocation4 [shape = 'u8[4096]{0}', space=vmem, size = 0x1000, scoped, tag = 'input window, operand 1, single buffered']
    #allocation5 [shape = 's32[1]{0}', space=sflag, size = 0x4, scoped, tag = 'scoped memory for tpu_custom_call.1']
    %11 = vsyncpa [#allocation5], 0
    // Predicated region
    $region2: #{tpu_custom_call.1} parent=1 // pred_check
      _
    $region3: #{tpu_custom_call.1} parent=1 // pred_check_branch
      %13 = sbr.rel (0) target = $region5
    $region4: #{tpu_custom_call.1} parent=1 // pred_region
      _
    $region5: #{tpu_custom_call.1} parent=1 // pred_fallthru
      _
    // Predicated region
    $region6: #{tpu_custom_call.1} parent=1 // pred_check
      _
    $region7: #{tpu_custom_call.1} parent=1 // pred_check_branch
      %15 = sbr.rel (0) target = $region9
    $region8: #{tpu_custom_call.1} parent=1 // pred_region
      %17 = vsyncadd [#allocation5], 0
      %s19 = sshll.u32 %s1, 4
      %s20 = int_to_ptr.hbm [resolvable:$true] %s19
      %s21 = sshll.u32 [#allocation4], 4
      %s22 = int_to_ptr.vmem [resolvable:$true] %s21
      %24 = dma.hbm_to_vmem [thread:$0]  %s20, 128, %s22, [#allocation5]
    $region9: #{tpu_custom_call.1} parent=1 // pred_fallthru
      _
    // Predicated region
    $region10: #{tpu_custom_call.1} parent=1 // pred_check
      _
    $region11: #{tpu_custom_call.1} parent=1 // pred_check_branch
      %26 = sbr.rel (0) target = $region13
    $region12: #{tpu_custom_call.1} parent=1 // pred_region
      _
    $region13: #{tpu_custom_call.1} parent=1 // pred_fallthru
      _
    // Predicated region
    $region14: #{tpu_custom_call.1} parent=1 // pred_check
      _
    $region15: #{tpu_custom_call.1} parent=1 // pred_check_branch
      %28 = sbr.rel (0) target = $region17
    $region16: #{tpu_custom_call.1} parent=1 // pred_region
      _
    $region17: #{tpu_custom_call.1} parent=1 // pred_fallthru
      _
    // Predicated region
    $region18: #{tpu_custom_call.1} parent=1 // pred_check
      _
    $region19: #{tpu_custom_call.1} parent=1 // pred_check_branch
      %30 = sbr.rel (0) target = $region21
    $region20: #{tpu_custom_call.1} parent=1 // pred_region
      %32 = dma.done [#allocation5], 128
    $region21: #{tpu_custom_call.1} parent=1 // pred_fallthru
      _
    %p33 = scmp.eq.s32.totalorder 0, 0
    // Predicated region
    $region22: #{tpu_custom_call.1} parent=1 // pred_check
      %p34 = pneg %p33
    $region23: #{tpu_custom_call.1} parent=1 // pred_check_branch
      %36 = sbr.rel (%p34) target = $region25
    $region24: #{tpu_custom_call.1} parent=1 // pred_region
      %vm37 = vcmask 7168
      %38 = vst.msk [vmem:[#allocation2] sm:$0xff] %vm37, -inf
      %39 = vst.msk [vmem:[#allocation3] sm:$0xff] %vm37, inf
    $region25: #{tpu_custom_call.1} parent=1 // pred_fallthru
      _
    %v40 = vld [vmem:[%s0] sm:$0xff]
    %v41 = vld [vmem:[#allocation4] sm:$0xff]
    %42 = vmatpush.xpose.msra.mxu0 0.0
    %43 = vmatpush.xpose.msra.mxu0 0.0
    %44 = vmatpush.xpose.msra.mxu0 0.0
    %45 = vmatpush.xpose.msra.mxu0 0.0
    %46 = vmatpush.xpose.msra.mxu0 0.0
    %47 = vmatpush.xpose.msra.mxu0 0.0
    %48 = vmatpush.xpose.msra.mxu0 0.0
    %49 = vmatpush.xpose.msra.mxu0 0.0
    %50 = vmatpush.xpose.msra.mxu0 0.0
    %51 = vmatpush.xpose.msra.mxu0 0.0
    %52 = vmatpush.xpose.msra.mxu0 0.0
    %53 = vmatpush.xpose.msra.mxu0 0.0
    %54 = vmatpush.xpose.msra.mxu0 0.0
    %55 = vmatpush.xpose.msra.mxu0 0.0
    %56 = vmatpush.xpose.msra.mxu0 0.0
    %57 = vmatpush.xpose.msra.mxu0 %v41
    %58 = vmatmul.f32.gmra.mxu0 %v40
    %v59 = vpop.f32.mrf.mxu0
    %v60 = vadd.f32 0.0, %v59
    %61 = vdwg.mxu0
    %v62 = vmul.f32 %v41, %v41
    %63 = vmatpush.xpose.msra.mxu0 0.0
    %64 = vmatpush.xpose.msra.mxu0 0.0
    %65 = vmatpush.xpose.msra.mxu0 0.0
    %66 = vmatpush.xpose.msra.mxu0 0.0
    %67 = vmatpush.xpose.msra.mxu0 0.0
    %68 = vmatpush.xpose.msra.mxu0 0.0
    %69 = vmatpush.xpose.msra.mxu0 0.0
    %70 = vmatpush.xpose.msra.mxu0 0.0
    %71 = vmatpush.xpose.msra.mxu0 0.0
    %72 = vmatpush.xpose.msra.mxu0 0.0
    %73 = vmatpush.xpose.msra.mxu0 0.0
    %74 = vmatpush.xpose.msra.mxu0 0.0
    %75 = vmatpush.xpose.msra.mxu0 0.0
    %76 = vmatpush.xpose.msra.mxu0 0.0
    %77 = vmatpush.xpose.msra.mxu0 0.0
    %78 = vmatpush.xpose.msra.mxu0 %v62
    %79 = vmatmul.f32.gmra.mxu0 1.0
    %v80 = vpop.f32.mrf.mxu0
    %v81 = vadd.f32 0.0, %v80
    %82 = vdwg.mxu0
    %v83 = vmul.f32 %v60, 2.0
    %v84 = vperm.slane %v81, 0
    %v85 = vsub.f32 %v84, %v83
    %v86 = vld [vmem:[%s2] sm:$0xff]
    %v87 = vld [vmem:[%s3] sm:$0x1]
    %88 = vset.pattern.permute.xlu0 0
    %89 = vperm.xlu0 %88, %v86
    %v90 = vpop.permute.xlu0 %89
    %v91 = vperm.slane %v87, 0
    %vm92 = vcmp.eq.s32.totalorder %v90, %v91
    %s93 = smul.u32 0, 8
    %v94 = vlaneseq
    %v95 = vand.u32 %v94, 127
    %v96 = vstv %s93
    %v97 = vadd.s32 %v96, %v95
    %vm98 = vcmp.lt.s32.totalorder %v97, 8
    %v99 = vsel %vm98, 1, 0
    %vm100 = vcmp.eq.s32.totalorder %v99, 1
    %vm101 = vmand %vm92, %vm100
    %v102 = vsel %vm101, %v85, -inf
    %vm103 = vmxor %vm92, 1
    %vm104 = vmand %vm103, %vm100
    %v105 = vsel %vm104, %v85, inf
    %v106 = vld [vmem:[#allocation2] sm:$0xff]
    %vm107 = vcmask 64512
    %v108 = vsel %vm107, %v102, -inf
    %109 = vmax.xlane.f32.xlu0 %v108
    %v110 = vpop.xlane.xlu0 %109
    %v111 = vmax.f32 %v106, %v110
    %vm112 = vcmask 7168
    %113 = vst.msk [vmem:[#allocation2] sm:$0xff] %vm112, %v111
    %v114 = vld [vmem:[#allocation3] sm:$0xff]
    %v115 = vsel %vm107, %v105, inf
    %116 = vmin.xlane.f32.xlu0 %v115
    %v117 = vpop.xlane.xlu0 %116
    %v118 = vmin.f32 %v114, %v117
    %119 = vst.msk [vmem:[#allocation3] sm:$0xff] %vm112, %v118
    // Predicated region
    $region26: #{tpu_custom_call.1} parent=1 // pred_check
      %p120 = pneg %p33
    $region27: #{tpu_custom_call.1} parent=1 // pred_check_branch
      %122 = sbr.rel (%p120) target = $region29
    $region28: #{tpu_custom_call.1} parent=1 // pred_region
      %v123 = vmul.f32 %v40, %v40
      %124 = vadd.xlane.f32.xlu0 %v123
      %v125 = vpop.xlane.xlu0 %124
      %v126 = vld [vmem:[#allocation2] sm:$0xff]
      %v127 = vadd.f32 %v125, %v126
      %v128 = vmax.f32 %v127, 1e-12
      %v129 = vrsqrt.pop %v128
      %v130 = vmul.f32 %v129, %v128
      %v131 = vmul.f32 %v130, %v129
      %v132 = vmul.f32 0.5, %v131
      %v133 = vsub.f32 1.5, %v132
      %v134 = vmul.f32 %v129, %v133
      %v135 = vmul.f32 %v128, %v134
      %vm136 = vcmp.eq.f32.partialorder %v128, inf
      %v137 = vsel %vm136, %v128, %v135
      %vm138 = vcmp.eq.f32.partialorder %v128, 0.0
      %v139 = vand.u32 %v128, 2147483648
      %v140 = vsel %vm138, %v139, %v137
      %141 = vst.msk [vmem:[%s4] sm:$0xff] %vm112, %v140
      %v142 = vld [vmem:[#allocation3] sm:$0xff]
      %v143 = vadd.f32 %v125, %v142
      %v144 = vmax.f32 %v143, 1e-12
      %v145 = vrsqrt.pop %v144
      %v146 = vmul.f32 %v145, %v144
      %v147 = vmul.f32 %v146, %v145
      %v148 = vmul.f32 0.5, %v147
      %v149 = vsub.f32 1.5, %v148
      %v150 = vmul.f32 %v145, %v149
      %v151 = vmul.f32 %v144, %v150
      %vm152 = vcmp.eq.f32.partialorder %v144, inf
      %v153 = vsel %vm152, %v144, %v151
      %vm154 = vcmp.eq.f32.partialorder %v144, 0.0
      %v155 = vand.u32 %v144, 2147483648
      %v156 = vsel %vm154, %v155, %v153
      %157 = vst.msk [vmem:[%s5] sm:$0xff] %vm112, %v156
    $region29: #{tpu_custom_call.1} parent=1 // pred_fallthru
      _
    // Predicated region
    $region30: #{tpu_custom_call.1} parent=1 // pred_check
      _
    $region31: #{tpu_custom_call.1} parent=1 // pred_check_branch
      %159 = sbr.rel (0) target = $region33
    $region32: #{tpu_custom_call.1} parent=1 // pred_region
      _
    $region33: #{tpu_custom_call.1} parent=1 // pred_fallthru
      _
    // Predicated region
    $region34: #{tpu_custom_call.1} parent=1 // pred_check
      _
    $region35: #{tpu_custom_call.1} parent=1 // pred_check_branch
      %161 = sbr.rel (0) target = $region37
    $region36: #{tpu_custom_call.1} parent=1 // pred_region
      _
    $region37: #{tpu_custom_call.1} parent=1 // pred_fallthru
      _
    // Predicated region
    $region38: #{tpu_custom_call.1} parent=1 // pred_check
      _
    $region39: #{tpu_custom_call.1} parent=1 // pred_check_branch
      %163 = sbr.rel (0) target = $region41
    $region40: #{tpu_custom_call.1} parent=1 // pred_region
      _
    $region41: #{tpu_custom_call.1} parent=1 // pred_fallthru
      _
    // Predicated region
    $region42: #{tpu_custom_call.1} parent=1 // pred_check
      _
    $region43: #{tpu_custom_call.1} parent=1 // pred_check_branch
      %165 = sbr.rel (0) target = $region45
    $region44: #{tpu_custom_call.1} parent=1 // pred_region
      _
    $region45: #{tpu_custom_call.1} parent=1 // pred_fallthru
      _
    %166 = vsyncpa [#allocation5], 1

</llo_original>
